<compile_context>
chip_gen: v7x
topology: tpu7x:2x2x1
jax: 0.10.0
libtpu: 0.0.40
codegen_flags: <defaults>
</compile_context>

<pallas_src>
import functools

import jax
import jax.numpy as jnp
from jax.experimental import pallas as pl
from jax.experimental.pallas import tpu as pltpu


# ---------------------------------------------------------------------------
# Kernel
# ---------------------------------------------------------------------------
def gemma_mlp_kernel(x_ref, wgu_ref, wd_ref, o_ref, acc_ref, *, tI):
    # x_ref:   (tm, H)       tile of token rows (re-fetched once per row tile)
    # wgu_ref: (H, 2*tI)     packed [gate | up] weight chunk k (lead dim squeezed)
    # wd_ref:  (tI, H)       down_proj weight chunk k (pre-transposed)
    # o_ref:   (tm, H)       output tile (same block index across k)
    # acc_ref: (tm, H) f32   accumulator scratch
    k = pl.program_id(1)

    @pl.when(k == 0)
    def _():
        acc_ref[...] = jnp.zeros_like(acc_ref)

    x = x_ref[...]                                  # native dtype into the MXU
    gu = jnp.dot(x, wgu_ref[...],                   # (tm, 2*tI), f32 accumulate
                 preferred_element_type=jnp.float32)
    # tI is a multiple of 128 (or the full I), so this split lands on a vreg
    # lane boundary -> no cross-lane relayout.
    gate = gu[:, :tI]
    up = gu[:, tI:]

    # GELU with tanh approximation (matches torch gelu(approximate='tanh')),
    # done in f32 on the EUP, then cast back for the (bf16) down matmul.
    hidden = (jax.nn.gelu(gate, approximate=True) * up).astype(wd_ref.dtype)

    acc_ref[...] += jnp.dot(hidden, wd_ref[...],
                            preferred_element_type=jnp.float32)

    @pl.when(k == pl.num_programs(1) - 1)
    def _():
        o_ref[...] = acc_ref[...].astype(o_ref.dtype)


# ---------------------------------------------------------------------------
# Device-aware tile selection
# ---------------------------------------------------------------------------
def _chip_params():
    kind = ""
    try:
        kind = jax.devices()[0].device_kind.lower()
    except Exception:
        pass
    vmem = None
    try:
        vmem = int(pltpu.get_tpu_info().vmem_capacity_bytes)
    except Exception:
        vmem = None

    if "v7" in kind:
        p = dict(vmem=64 << 20, cores=2, tm_cap=512, tI_cap=512, w_bufs=2)
    elif "v6" in kind:
        p = dict(vmem=128 << 20, cores=1, tm_cap=1024, tI_cap=512, w_bufs=2)
    elif "v5p" in kind:
        p = dict(vmem=128 << 20, cores=1, tm_cap=512, tI_cap=512, w_bufs=2)
    elif "v5" in kind:  # v5e / v5 lite
        p = dict(vmem=128 << 20, cores=1, tm_cap=256, tI_cap=256, w_bufs=3)
    elif "v2" in kind or "v3" in kind:
        p = dict(vmem=16 << 20, cores=1, tm_cap=256, tI_cap=256, w_bufs=2)
    else:  # unknown chip: conservative 64 MiB VMEM budget
        p = dict(vmem=64 << 20, cores=1, tm_cap=512, tI_cap=512, w_bufs=2)
    if vmem:
        p["vmem"] = vmem
    return p


def _pick_tile(total, cap, quanta):
    """Largest divisor of `total` that is <= cap, preferring multiples of the
    quanta in order; falls back to any divisor (including the full extent,
    which is exempt from the (8,128) block rule)."""
    cap = max(1, min(cap, total))
    for q in quanta:
        t = cap - cap % q
        while t >= q:
            if total % t == 0:
                return t
            t -= q
    for t in range(cap, 0, -1):
        if total % t == 0:
            return t
    return total


def _vmem_footprint(tm, tI, H, itemsize, w_bufs):
    io = 2 * tm * H * itemsize * 2                       # x + out, double-buffered
    w = (H * 2 * tI + tI * H) * itemsize * w_bufs        # wgu + wd blocks
    acc = tm * H * 4                                     # f32 accumulator scratch
    inter = tm * 2 * tI * 4 + tm * tI * 4 + tm * tI * itemsize  # gu / gelu / hidden
    return io + w + acc + inter


def _choose_tiles(M, H, I, dtype, chip, tm_user=None, tI_user=None):
    itemsize = jnp.dtype(dtype).itemsize
    sub_q = 16 if itemsize < 4 else 8          # bf16 min sublane tile is (16,128)
    tm_quanta = (256, 128, sub_q)
    tI_quanta = (256, 128)

    tm_cap = chip["tm_cap"] if tm_user is None else tm_user
    tI_cap = chip["tI_cap"] if tI_user is None else tI_user

    tI = _pick_tile(I, tI_cap, tI_quanta)
    tm = _pick_tile(M, tm_cap, tm_quanta)

    # v7x: the "parallel" M axis is what shards across the 2 TensorCores;
    # avoid a grid where one core idles.
    cores = chip["cores"]
    if cores > 1 and (M // tm) % cores != 0:
        for t in range(tm, 0, -1):
            if M % t == 0 and (M // t) % cores == 0:
                if t >= max(tm // 2, sub_q) and (t % sub_q == 0 or t == M):
                    tm = t
                break

    # Shrink tm (then tI) until the tile footprint fits the VMEM budget.
    budget = chip["vmem"] - max(8 << 20, chip["vmem"] // 16)
    while _vmem_footprint(tm, tI, H, itemsize, chip["w_bufs"]) > budget:
        shrunk = False
        if tm > sub_q:
            new_tm = _pick_tile(M, max(sub_q, tm // 2), tm_quanta)
            if new_tm < tm:
                tm, shrunk = new_tm, True
        if not shrunk and tI > 128:
            new_tI = _pick_tile(I, max(128, tI // 2), tI_quanta)
            if new_tI < tI:
                tI, shrunk = new_tI, True
        if not shrunk:
            break
    return tm, tI


# ---------------------------------------------------------------------------
# Weight prep + pallas_call wrapper
# ---------------------------------------------------------------------------
def prepare_gemma_mlp_weights(w_gate, w_up, w_down, tI):
    """One-time weight prep (do this at load time in a real deployment):
    pack gate/up into [nk, H, 2*tI] chunks and transpose down to [I, H]."""
    I, H = w_gate.shape
    assert I % tI == 0
    nk = I // tI
    wg_t = w_gate.T.reshape(H, nk, tI)                  # [H, nk, tI]
    wu_t = w_up.T.reshape(H, nk, tI)                    # [H, nk, tI]
    wgu = jnp.concatenate([wg_t, wu_t], axis=-1)        # [H, nk, 2*tI]
    wgu = jnp.transpose(wgu, (1, 0, 2))                 # [nk, H, 2*tI]
    wd_t = w_down.T                                     # [I, H]
    return wgu, wd_t


def _weight_block_spec(shape, index_map, buffer_count):
    """Weight-streaming spec; deeper pipelining (Buffered(3)) on v5e, where
    the kernel sits right at the DMA/compute balance point."""
    if buffer_count is None or buffer_count == 2:
        return pl.BlockSpec(shape, index_map)
    try:
        return pl.BlockSpec(shape, index_map,
                            pipeline_mode=pl.Buffered(buffer_count))
    except Exception:
        return pl.BlockSpec(shape, index_map)


def gemma_mlp_packed(x2d, wgu, wd_t, *, tm, tI, w_bufs=2, vmem_capacity=None,
                     vmem_limit_bytes=None):
    """x2d: [M, H]; wgu: [nk, H, 2*tI]; wd_t: [I, H]."""
    M, H = x2d.shape
    nk = wgu.shape[0]
    I = nk * tI
    assert wgu.shape == (nk, H, 2 * tI)
    assert wd_t.shape == (I, H)
    assert M % tm == 0

    itemsize = jnp.dtype(x2d.dtype).itemsize
    footprint = _vmem_footprint(tm, tI, H, itemsize, w_bufs)
    if vmem_limit_bytes is None:
        vmem_limit_bytes = max(footprint + (8 << 20), 32 << 20)
        if vmem_capacity is not None:
            vmem_limit_bytes = min(vmem_limit_bytes, vmem_capacity - (4 << 20))
        vmem_limit_bytes = int(max(vmem_limit_bytes, footprint))

    n_row_tiles = M // tm
    cost = pl.CostEstimate(
        flops=6 * M * H * I,                       # gate + up + down matmuls
        transcendentals=M * I,                     # tanh in gelu
        # weights are re-streamed once per row tile:
        bytes_accessed=itemsize * (2 * M * H + n_row_tiles * 3 * H * I),
    )

    kernel = functools.partial(gemma_mlp_kernel, tI=tI)

    return pl.pallas_call(
        kernel,
        out_shape=jax.ShapeDtypeStruct((M, H), x2d.dtype),
        grid_spec=pltpu.PrefetchScalarGridSpec(
            num_scalar_prefetch=0,
            grid=(n_row_tiles, nk),                # I-reduction axis last
            in_specs=[
                pl.BlockSpec((tm, H), lambda i, k: (i, 0)),           # x rows
                _weight_block_spec((None, H, 2 * tI),                 # gate|up
                                   lambda i, k: (k, 0, 0), w_bufs),
                _weight_block_spec((tI, H),                           # down
                                   lambda i, k: (k, 0), w_bufs),
            ],
            out_specs=pl.BlockSpec((tm, H), lambda i, k: (i, 0)),
            scratch_shapes=[pltpu.VMEM((tm, H), jnp.float32)],
        ),
        compiler_params=pltpu.CompilerParams(
            dimension_semantics=("parallel", "arbitrary"),
            vmem_limit_bytes=vmem_limit_bytes,
        ),
        cost_estimate=cost,
    )(x2d, wgu, wd_t)


def gemma_mlp(x, w_gate, w_up, w_down, *, tm=None, tI=None,
              vmem_limit_bytes=None):
    """x: [B, S, H]; weights in nn.Linear convention:
       w_gate, w_up: [I, H]; w_down: [H, I]."""
    B, S, H = x.shape
    I = w_gate.shape[0]
    M = B * S

    chip = _chip_params()
    tm_, tI_ = _choose_tiles(M, H, I, x.dtype, chip, tm_user=tm, tI_user=tI)

    # TODO(synk): in a real model, call prepare_gemma_mlp_weights once at
    # weight-load time instead of per forward call.
    wgu, wd_t = prepare_gemma_mlp_weights(w_gate, w_up, w_down, tI_)

    out2d = gemma_mlp_packed(x.reshape(M, H), wgu, wd_t, tm=tm_, tI=tI_,
                             w_bufs=chip["w_bufs"], vmem_capacity=chip["vmem"],
                             vmem_limit_bytes=vmem_limit_bytes)
    return out2d.reshape(B, S, H)


def gemma_mlp_ref(x, w_gate, w_up, w_down):
    g = jnp.einsum("bsh,ih->bsi", x, w_gate)
    u = jnp.einsum("bsh,ih->bsi", x, w_up)
    h = jax.nn.gelu(g, approximate=True) * u
    return jnp.einsum("bsi,hi->bsh", h, w_down)


if __name__ == "__main__":
    key = jax.random.PRNGKey(0)

    # --- Test 1: small f32 shapes (single I-chunk path) ---
    B, S, H, I = 2, 8, 32, 64
    kx, kg, ku, kd, k2 = jax.random.split(key, 5)
    x = jax.random.normal(kx, (B, S, H), dtype=jnp.float32)
    w_gate = jax.random.normal(kg, (I, H), dtype=jnp.float32) * 0.05
    w_up = jax.random.normal(ku, (I, H), dtype=jnp.float32) * 0.05
    w_down = jax.random.normal(kd, (H, I), dtype=jnp.float32) * 0.05

    out = jax.block_until_ready(gemma_mlp(x, w_gate, w_up, w_down))
    ref = gemma_mlp_ref(x, w_gate, w_up, w_down)
    assert out.shape == (B, S, H)
    assert jnp.allclose(out, ref, atol=2e-5, rtol=2e-5)

    # --- Test 2: bf16, multi-chunk I reduction (exercises the accumulator) ---
    B2, S2, H2, I2 = 2, 64, 256, 512
    kx2, kg2, ku2, kd2 = jax.random.split(k2, 4)
    x2 = jax.random.normal(kx2, (B2, S2, H2), dtype=jnp.float32).astype(jnp.bfloat16)
    wg2 = (jax.random.normal(kg2, (I2, H2), dtype=jnp.float32) * 0.05).astype(jnp.bfloat16)
    wu2 = (jax.random.normal(ku2, (I2, H2), dtype=jnp.float32) * 0.05).astype(jnp.bfloat16)
    wd2 = (jax.random.normal(kd2, (H2, I2), dtype=jnp.float32) * 0.05).astype(jnp.bfloat16)

    out2 = jax.block_until_ready(gemma_mlp(x2, wg2, wu2, wd2, tI=128))
    ref2 = gemma_mlp_ref(x2.astype(jnp.float32), wg2.astype(jnp.float32),
                         wu2.astype(jnp.float32), wd2.astype(jnp.float32))
    assert out2.shape == (B2, S2, H2)
    assert jnp.allclose(out2.astype(jnp.float32), ref2, atol=5e-2, rtol=5e-2)

    print("KERNEL_OK")
</pallas_src>

<mosaic_0001>
module attributes {stable_mosaic.version = 11 : i64} {
  func.func @gemma_mlp_kernel(%arg0: i32, %arg1: i32, %arg2: memref<16x32xf32, #tpu.memory_space<vmem>>, %arg3: memref<1x32x128xf32, #tpu.memory_space<vmem>>, %arg4: memref<64x32xf32, #tpu.memory_space<vmem>>, %arg5: memref<16x32xf32, #tpu.memory_space<vmem>>, %arg6: memref<16x32xf32, #tpu.memory_space<vmem>>) attributes {dimension_semantics = [#tpu.dimension_semantics<parallel>, #tpu.dimension_semantics<arbitrary>], iteration_bounds = array<i64: 1, 1>, scalar_prefetch = 0 : i64, scratch_operands = 1 : i64, tpu.core_type = #tpu.core_type<tc>, window_params = [{transform_indices = @transform_0, window_bounds = array<i64: 16, 32>}, {transform_indices = @transform_1, window_bounds = array<i64: 1, 32, 128>}, {transform_indices = @transform_2, window_bounds = array<i64: 64, 32>}, {transform_indices = @transform_3, window_bounds = array<i64: 16, 32>}]} {
    %c0_i32 = arith.constant 0 : i32
    %0 = arith.cmpi eq, %arg1, %c0_i32 : i32
    %1 = arith.extui %0 : i1 to i32
    %c0_i32_0 = arith.constant 0 : i32
    %2 = arith.cmpi ne, %1, %c0_i32_0 : i32
    scf.if %2 {
      %cst_18 = arith.constant 0.000000e+00 : f32
      %31 = vector.broadcast %cst_18 : f32 to vector<16x32xf32>
      %c0_19 = arith.constant 0 : index
      %c0_20 = arith.constant 0 : index
      %32 = vector.load %arg6[%c0_19, %c0_20] : memref<16x32xf32, #tpu.memory_space<vmem>>, vector<16x32xf32>
      tpu.vector_store %arg6[%c0_19, %c0_20], %31 {strides = array<i32>} : memref<16x32xf32, #tpu.memory_space<vmem>>, vector<16x32xf32>,
    } else {
    }
    %c0 = arith.constant 0 : index
    %c0_1 = arith.constant 0 : index
    %3 = vector.load %arg2[%c0, %c0_1] : memref<16x32xf32, #tpu.memory_space<vmem>>, vector<16x32xf32>
    %c0_2 = arith.constant 0 : index
    %c0_3 = arith.constant 0 : index
    %c0_4 = arith.constant 0 : index
    %4 = vector.load %arg3[%c0_2, %c0_3, %c0_4] : memref<1x32x128xf32, #tpu.memory_space<vmem>>, vector<1x32x128xf32>
    %5 = vector.shape_cast %4 : vector<1x32x128xf32> to vector<32x128xf32>
    %cst = arith.constant dense<0.000000e+00> : vector<16x128xf32>
    %6 = tpu.matmul %3, %5, %cst {dimension_numbers = #tpu.dot_dimension_numbers<[1], [0], [0], [1], [0, 0, 1, 1], [], []>} : vector<16x32xf32>, vector<32x128xf32>, vector<16x128xf32> -> vector<16x128xf32>
    %7 = vector.extract_strided_slice %6 {offsets = [0, 0], sizes = [16, 64], strides = [1, 1]} : vector<16x128xf32> to vector<16x64xf32>
    %8 = vector.extract_strided_slice %6 {offsets = [0, 64], sizes = [16, 64], strides = [1, 1]} : vector<16x128xf32> to vector<16x64xf32>
    %9 = arith.mulf %7, %7 : vector<16x64xf32>
    %10 = arith.mulf %7, %9 : vector<16x64xf32>
    %cst_5 = arith.constant 4.471500e-02 : f32
    %11 = vector.broadcast %cst_5 : f32 to vector<16x64xf32>
    %12 = arith.mulf %11, %10 : vector<16x64xf32>
    %13 = arith.addf %7, %12 : vector<16x64xf32>
    %cst_6 = arith.constant 0.797884583 : f32
    %14 = vector.broadcast %cst_6 : f32 to vector<16x64xf32>
    %15 = arith.mulf %14, %13 : vector<16x64xf32>
    %16 = math.tanh %15 : vector<16x64xf32>
    %cst_7 = arith.constant 1.000000e+00 : f32
    %17 = vector.broadcast %cst_7 : f32 to vector<16x64xf32>
    %18 = arith.addf %17, %16 : vector<16x64xf32>
    %cst_8 = arith.constant 5.000000e-01 : f32
    %19 = vector.broadcast %cst_8 : f32 to vector<16x64xf32>
    %20 = arith.mulf %19, %18 : vector<16x64xf32>
    %21 = arith.mulf %7, %20 : vector<16x64xf32>
    %22 = arith.mulf %21, %8 : vector<16x64xf32>
    %c0_9 = arith.constant 0 : index
    %c0_10 = arith.constant 0 : index
    %23 = vector.load %arg6[%c0_9, %c0_10] : memref<16x32xf32, #tpu.memory_space<vmem>>, vector<16x32xf32>
    %c0_11 = arith.constant 0 : index
    %c0_12 = arith.constant 0 : index
    %24 = vector.load %arg4[%c0_11, %c0_12] : memref<64x32xf32, #tpu.memory_space<vmem>>, vector<64x32xf32>
    %cst_13 = arith.constant dense<0.000000e+00> : vector<16x32xf32>
    %25 = tpu.matmul %22, %24, %cst_13 {dimension_numbers = #tpu.dot_dimension_numbers<[1], [0], [0], [1], [0, 0, 1, 1], [], []>} : vector<16x64xf32>, vector<64x32xf32>, vector<16x32xf32> -> vector<16x32xf32>
    %26 = arith.addf %23, %25 : vector<16x32xf32>
    %c0_14 = arith.constant 0 : index
    %c0_15 = arith.constant 0 : index
    %27 = vector.load %arg6[%c0_14, %c0_15] : memref<16x32xf32, #tpu.memory_space<vmem>>, vector<16x32xf32>
    tpu.vector_store %arg6[%c0_14, %c0_15], %26 {strides = array<i32>} : memref<16x32xf32, #tpu.memory_space<vmem>>, vector<16x32xf32>,
    %c0_i32_16 = arith.constant 0 : i32
    %28 = arith.cmpi eq, %arg1, %c0_i32_16 : i32
    %29 = arith.extui %28 : i1 to i32
    %c0_i32_17 = arith.constant 0 : i32
    %30 = arith.cmpi ne, %29, %c0_i32_17 : i32
    scf.if %30 {
      %c0_18 = arith.constant 0 : index
      %c0_19 = arith.constant 0 : index
      %31 = vector.load %arg6[%c0_18, %c0_19] : memref<16x32xf32, #tpu.memory_space<vmem>>, vector<16x32xf32>
      %c0_20 = arith.constant 0 : index
      %c0_21 = arith.constant 0 : index
      %32 = vector.load %arg5[%c0_20, %c0_21] : memref<16x32xf32, #tpu.memory_space<vmem>>, vector<16x32xf32>
      tpu.vector_store %arg5[%c0_20, %c0_21], %31 {strides = array<i32>} : memref<16x32xf32, #tpu.memory_space<vmem>>, vector<16x32xf32>,
    } else {
    }
    return
  }
  func.func @transform_0(%arg0: i32, %arg1: i32) -> (i32, i32) {
    %c0_i32 = arith.constant 0 : i32
    %c0_i32_0 = arith.constant 0 : i32
    return %arg0, %c0_i32 : i32, i32
  }
  func.func @transform_1(%arg0: i32, %arg1: i32) -> (i32, i32, i32) {
    %c0_i32 = arith.constant 0 : i32
    %c0_i32_0 = arith.constant 0 : i32
    %c0_i32_1 = arith.constant 0 : i32
    return %arg1, %c0_i32, %c0_i32_0 : i32, i32, i32
  }
  func.func @transform_2(%arg0: i32, %arg1: i32) -> (i32, i32) {
    %c0_i32 = arith.constant 0 : i32
    %c0_i32_0 = arith.constant 0 : i32
    return %arg1, %c0_i32 : i32, i32
  }
  func.func @transform_3(%arg0: i32, %arg1: i32) -> (i32, i32) {
    %c0_i32 = arith.constant 0 : i32
    %c0_i32_0 = arith.constant 0 : i32
    return %arg0, %c0_i32 : i32, i32
  }
}

</mosaic_0001>

<llo_original>
// kernel: tpu_custom_call.1
$region0: #{tpu_custom_call.1}
  #allocation0 [shape = 'u32[]', space=smem, size = 0x4, offset = 0x4, fixed_abs, tag = 'smem constant byte address 0x4 - core index']
  #allocation1 [shape = 'u32[144,128]{1,0:T(1,128)}', space=vmem, size = 0x12000, scoped, tag = 'internal scratch']
  #allocation2 [shape = 'f32[16,32]{1,0:T(8,128)}', space=vmem, size = 0x2000, scoped, tag = 'scratch operand']
  %s0 = inlined_call_operand.vmem [shape: f32[16,32], index: 0, kind: input, shape index: {}]
  %s1 = inlined_call_operand.vmem [shape: f32[1,32,128], index: 1, kind: input, shape index: {}]
  %s2 = inlined_call_operand.vmem [shape: f32[64,32], index: 2, kind: input, shape index: {}]
  %s3 = inlined_call_operand.hbm [shape: f32[16,32], index: 3, kind: output, shape index: {}]
  %s4 = sld [smem:[#allocation0]]
  $region30: #{tpu_custom_call.1} parent=0
    _
  %s6 = ssub.s32 1, %s4
  %s7 = scalar_select 0, %s6, %s4
  $region1: #{tpu_custom_call.1} parent=0
    #allocation3 [shape = 'u8[8192]{0}', space=vmem, size = 0x2000, scoped, tag = 'output window, operand 0, single buffered']
    #allocation4 [shape = 's32[1]{0}', space=sflag, size = 0x4, scoped, tag = 'scoped memory for tpu_custom_call.1']
    %8 = vsyncpa [#allocation4], 0
    // Predicated region
    $region2: #{tpu_custom_call.1} parent=1 // pred_check
      _
    $region3: #{tpu_custom_call.1} parent=1 // pred_check_branch
      %10 = sbr.rel (0) target = $region5
    $region4: #{tpu_custom_call.1} parent=1 // pred_region
      _
    $region5: #{tpu_custom_call.1} parent=1 // pred_fallthru
      _
    // Predicated region
    $region6: #{tpu_custom_call.1} parent=1 // pred_check
      _
    $region7: #{tpu_custom_call.1} parent=1 // pred_check_branch
      %12 = sbr.rel (0) target = $region9
    $region8: #{tpu_custom_call.1} parent=1 // pred_region
      _
    $region9: #{tpu_custom_call.1} parent=1 // pred_fallthru
      _
    // Predicated region
    $region10: #{tpu_custom_call.1} parent=1 // pred_check
      _
    $region11: #{tpu_custom_call.1} parent=1 // pred_check_branch
      %14 = sbr.rel (0) target = $region13
    $region12: #{tpu_custom_call.1} parent=1 // pred_region
      _
    $region13: #{tpu_custom_call.1} parent=1 // pred_fallthru
      _
    %p15 = scmp.eq.s32.totalorder 0, 0
    // Predicated region
    $region14: #{tpu_custom_call.1} parent=1 // pred_check
      %p16 = pneg %p15
    $region15: #{tpu_custom_call.1} parent=1 // pred_check_branch
      %18 = sbr.rel (%p16) target = $region17
    $region16: #{tpu_custom_call.1} parent=1 // pred_region
      %vm19 = vcmask 261120
      %20 = vst.msk [vmem:[#allocation2] sm:$0xff] %vm19, 0.0
      %21 = vst.msk [vmem:[#allocation2 + $0x8] sm:$0xff] %vm19, 0.0
    $region17: #{tpu_custom_call.1} parent=1 // pred_fallthru
      _
    %v22 = vld [vmem:[%s0] sm:$0xff]
    %v23 = vld [vmem:[%s0 + $0x8] sm:$0xff]
    %v24 = vld [vmem:[%s1] sm:$0xff]
    %v25 = vld [vmem:[%s1 + $0x8] sm:$0xff]
    %v26 = vld [vmem:[%s1 + $0x10] sm:$0xff]
    %v27 = vld [vmem:[%s1 + $0x18] sm:$0xff]
    %vm28 = vcmask 261120
    %v30 = vsel %vm28, %v22, 0
    %v33 = vsel %vm28, %v23, 0
    %35 = vmatprep.subr.mxu0 0.0
    %36 = vmatpush1.msra.mxu0 %v24
    %37 = vmatprep.subr.mxu0 0.0
    %38 = vmatpush1.msra.mxu0 %v25
    %39 = vmatprep.subr.mxu0 0.0
    %40 = vmatpush1.msra.mxu0 %v26
    %41 = vmatprep.subr.mxu0 0.0
    %42 = vmatpush1.msra.mxu0 %v27
    %43 = vmatprep.subr.mxu0 0.0
    %44 = vmatpush1.msra.mxu0 0.0
    %45 = vmatprep.subr.mxu0 0.0
    %46 = vmatpush1.msra.mxu0 0.0
    %47 = vmatprep.subr.mxu0 0.0
    %48 = vmatpush1.msra.mxu0 0.0
    %49 = vmatprep.subr.mxu0 0.0
    %50 = vmatpush1.msra.mxu0 0.0
    %51 = vmatprep.subr.mxu0 0.0
    %52 = vmatpush1.msra.mxu0 0.0
    %53 = vmatprep.subr.mxu0 0.0
    %54 = vmatpush1.msra.mxu0 0.0
    %55 = vmatprep.subr.mxu0 0.0
    %56 = vmatpush1.msra.mxu0 0.0
    %57 = vmatprep.subr.mxu0 0.0
    %58 = vmatpush1.msra.mxu0 0.0
    %59 = vmatprep.subr.mxu0 0.0
    %60 = vmatpush1.msra.mxu0 0.0
    %61 = vmatprep.subr.mxu0 0.0
    %62 = vmatpush1.msra.mxu0 0.0
    %63 = vmatprep.subr.mxu0 0.0
    %64 = vmatpush1.msra.mxu0 0.0
    %65 = vmatprep.subr.mxu0 0.0
    %66 = vmatpush1.msra.mxu0 0.0
    %67 = vmatprep.subr.mxu0 0.0
    %68 = vmatpush1.msra.mxu0 0.0
    %69 = vmatprep.subr.mxu0 0.0
    %70 = vmatpush1.msra.mxu0 0.0
    %71 = vmatprep.subr.mxu0 0.0
    %72 = vmatpush1.msra.mxu0 0.0
    %73 = vmatprep.subr.mxu0 0.0
    %74 = vmatpush1.msra.mxu0 0.0
    %75 = vmatprep.subr.mxu0 0.0
    %76 = vmatpush1.msra.mxu0 0.0
    %77 = vmatprep.subr.mxu0 0.0
    %78 = vmatpush1.msra.mxu0 0.0
    %79 = vmatprep.subr.mxu0 0.0
    %80 = vmatpush1.msra.mxu0 0.0
    %81 = vmatprep.subr.mxu0 0.0
    %82 = vmatpush1.msra.mxu0 0.0
    %83 = vmatprep.subr.mxu0 0.0
    %84 = vmatpush1.msra.mxu0 0.0
    %85 = vmatprep.subr.mxu0 0.0
    %86 = vmatpush1.msra.mxu0 0.0
    %87 = vmatprep.subr.mxu0 0.0
    %88 = vmatpush1.msra.mxu0 0.0
    %89 = vmatprep.subr.mxu0 0.0
    %90 = vmatpush1.msra.mxu0 0.0
    %91 = vmatprep.subr.mxu0 0.0
    %92 = vmatpush1.msra.mxu0 0.0
    %93 = vmatprep.subr.mxu0 0.0
    %94 = vmatpush1.msra.mxu0 0.0
    %95 = vmatprep.subr.mxu0 0.0
    %96 = vmatpush1.msra.mxu0 0.0
    %97 = vmatprep.subr.mxu0 0.0
    %98 = vmatpush1.msra.mxu0 0.0
    %99 = vmatprep.mubr.f32.mxu0 0.0
    %100 = vmatmul.mubr.f32.gmra.mrb[0].mxu0 %v30
    %v101 = vpop.f32.mrb[0].mxu0
    %v102 = vadd.f32 0.0, %v101
    %v103 = vpop.f32.mrb[0].mxu0
    %104 = vmatprep.mubr.f32.mxu0 0.0
    %105 = vmatmul.mubr.f32.gmra.mrb[0].mxu0 %v33
    %v106 = vpop.f32.mrb[0].mxu0
    %v107 = vadd.f32 0.0, %v106
    %v108 = vpop.f32.mrb[0].mxu0
    %109 = vdwg.mxu0
    %v110 = vmul.f32 %v102, %v102
    %v111 = vmul.f32 %v107, %v107
    %v112 = vmul.f32 %v102, %v110
    %v113 = vmul.f32 %v107, %v111
    %v114 = vmul.f32 %v112, 0.044715
    %v115 = vmul.f32 %v113, 0.044715
    %v116 = vadd.f32 %v102, %v114
    %v117 = vadd.f32 %v107, %v115
    %v118 = vmul.f32 %v116, 0.7978846
    %v119 = vmul.f32 %v117, 0.7978846
    %v120 = vtanh.pop %v118
    %v121 = vtanh.pop %v119
    %v122 = vadd.f32 %v120, 1.0
    %v123 = vadd.f32 %v121, 1.0
    %v124 = vmul.f32 %v122, 0.5
    %v125 = vmul.f32 %v123, 0.5
    %v126 = vmul.f32 %v102, %v124
    %v127 = vmul.f32 %v107, %v125
    %130 = vrot.lane.b32.xlu0 %v102, 64
    %v131 = vpop.permute.xlu0 %130
    %132 = vrot.lane.b32.xlu0 %v107, 64
    %v133 = vpop.permute.xlu0 %132
    %v136 = vmul.f32 %v126, %v131
    %v137 = vmul.f32 %v127, %v133
    %v138 = vld [vmem:[#allocation2] sm:$0xff]
    %v139 = vld [vmem:[#allocation2 + $0x8] sm:$0xff]
    %v140 = vld [vmem:[%s2] sm:$0xff]
    %v141 = vld [vmem:[%s2 + $0x8] sm:$0xff]
    %v142 = vld [vmem:[%s2 + $0x10] sm:$0xff]
    %v143 = vld [vmem:[%s2 + $0x18] sm:$0xff]
    %v144 = vld [vmem:[%s2 + $0x20] sm:$0xff]
    %v145 = vld [vmem:[%s2 + $0x28] sm:$0xff]
    %v146 = vld [vmem:[%s2 + $0x30] sm:$0xff]
    %v147 = vld [vmem:[%s2 + $0x38] sm:$0xff]
    %vm148 = vcmask 523264
    %v150 = vsel %vm148, %v136, 0
    %v153 = vsel %vm148, %v137, 0
    %155 = vmatprep.subr.mxu0 0.0
    %156 = vmatpush1.msra.mxu0 %v140
    %157 = vmatprep.subr.mxu0 0.0
    %158 = vmatpush1.msra.mxu0 %v141
    %159 = vmatprep.subr.mxu0 0.0
    %160 = vmatpush1.msra.mxu0 %v142
    %161 = vmatprep.subr.mxu0 0.0
    %162 = vmatpush1.msra.mxu0 %v143
    %163 = vmatprep.subr.mxu0 0.0
    %164 = vmatpush1.msra.mxu0 %v144
    %165 = vmatprep.subr.mxu0 0.0
    %166 = vmatpush1.msra.mxu0 %v145
    %167 = vmatprep.subr.mxu0 0.0
    %168 = vmatpush1.msra.mxu0 %v146
    %169 = vmatprep.subr.mxu0 0.0
    %170 = vmatpush1.msra.mxu0 %v147
    %171 = vmatprep.subr.mxu0 0.0
    %172 = vmatpush1.msra.mxu0 0.0
    %173 = vmatprep.subr.mxu0 0.0
    %174 = vmatpush1.msra.mxu0 0.0
    %175 = vmatprep.subr.mxu0 0.0
    %176 = vmatpush1.msra.mxu0 0.0
    %177 = vmatprep.subr.mxu0 0.0
    %178 = vmatpush1.msra.mxu0 0.0
    %179 = vmatprep.subr.mxu0 0.0
    %180 = vmatpush1.msra.mxu0 0.0
    %181 = vmatprep.subr.mxu0 0.0
    %182 = vmatpush1.msra.mxu0 0.0
    %183 = vmatprep.subr.mxu0 0.0
    %184 = vmatpush1.msra.mxu0 0.0
    %185 = vmatprep.subr.mxu0 0.0
    %186 = vmatpush1.msra.mxu0 0.0
    %187 = vmatprep.subr.mxu0 0.0
    %188 = vmatpush1.msra.mxu0 0.0
    %189 = vmatprep.subr.mxu0 0.0
    %190 = vmatpush1.msra.mxu0 0.0
    %191 = vmatprep.subr.mxu0 0.0
    %192 = vmatpush1.msra.mxu0 0.0
    %193 = vmatprep.subr.mxu0 0.0
    %194 = vmatpush1.msra.mxu0 0.0
    %195 = vmatprep.subr.mxu0 0.0
    %196 = vmatpush1.msra.mxu0 0.0
    %197 = vmatprep.subr.mxu0 0.0
    %198 = vmatpush1.msra.mxu0 0.0
    %199 = vmatprep.subr.mxu0 0.0
    %200 = vmatpush1.msra.mxu0 0.0
    %201 = vmatprep.subr.mxu0 0.0
    %202 = vmatpush1.msra.mxu0 0.0
    %203 = vmatprep.subr.mxu0 0.0
    %204 = vmatpush1.msra.mxu0 0.0
    %205 = vmatprep.subr.mxu0 0.0
    %206 = vmatpush1.msra.mxu0 0.0
    %207 = vmatprep.subr.mxu0 0.0
    %208 = vmatpush1.msra.mxu0 0.0
    %209 = vmatprep.subr.mxu0 0.0
    %210 = vmatpush1.msra.mxu0 0.0
    %211 = vmatprep.subr.mxu0 0.0
    %212 = vmatpush1.msra.mxu0 0.0
    %213 = vmatprep.subr.mxu0 0.0
    %214 = vmatpush1.msra.mxu0 0.0
    %215 = vmatprep.subr.mxu0 0.0
    %216 = vmatpush1.msra.mxu0 0.0
    %217 = vmatprep.subr.mxu0 0.0
    %218 = vmatpush1.msra.mxu0 0.0
    %219 = vmatprep.mubr.f32.mxu0 0.0
    %220 = vmatmul.mubr.f32.gmra.mrb[0].mxu0 %v150
    %v221 = vpop.f32.mrb[0].mxu0
    %v222 = vadd.f32 0.0, %v221
    %v223 = vpop.f32.mrb[0].mxu0
    %224 = vmatprep.mubr.f32.mxu0 0.0
    %225 = vmatmul.mubr.f32.gmra.mrb[0].mxu0 %v153
    %v226 = vpop.f32.mrb[0].mxu0
    %v227 = vadd.f32 0.0, %v226
    %v228 = vpop.f32.mrb[0].mxu0
    %229 = vdwg.mxu0
    %v230 = vadd.f32 %v138, %v222
    %v231 = vadd.f32 %v139, %v227
    %232 = vst.msk [vmem:[#allocation2] sm:$0xff] %vm28, %v230
    %233 = vst.msk [vmem:[#allocation2 + $0x8] sm:$0xff] %vm28, %v231
    // Predicated region
    $region18: #{tpu_custom_call.1} parent=1 // pred_check
      %p234 = pneg %p15
    $region19: #{tpu_custom_call.1} parent=1 // pred_check_branch
      %236 = sbr.rel (%p234) target = $region21
    $region20: #{tpu_custom_call.1} parent=1 // pred_region
      %v237 = vld [vmem:[#allocation2] sm:$0xff]
      %v238 = vld [vmem:[#allocation2 + $0x8] sm:$0xff]
      %239 = vst.msk [vmem:[#allocation3] sm:$0xff] %vm28, %v237
      %240 = vst.msk [vmem:[#allocation3 + $0x8] sm:$0xff] %vm28, %v238
    $region21: #{tpu_custom_call.1} parent=1 // pred_fallthru
      _
    // Predicated region
    $region22: #{tpu_custom_call.1} parent=1 // pred_check
      _
    $region23: #{tpu_custom_call.1} parent=1 // pred_check_branch
      %242 = sbr.rel (0) target = $region25
    $region24: #{tpu_custom_call.1} parent=1 // pred_region
      %s244 = ssub.s32 256, 256
      %245 = vsyncadd [#allocation4], %s244
      %s246 = sshll.u32 [#allocation3], 4
      %s247 = int_to_ptr.vmem [resolvable:$true] %s246
      %252 = dma.vmem_to_hbm [thread:$0]  %s247, 256, %s3, [#allocation4], 128, 128, 8
    $region25: #{tpu_custom_call.1} parent=1 // pred_fallthru
      _
    // Predicated region
    $region26: #{tpu_custom_call.1} parent=1 // pred_check
      _
    $region27: #{tpu_custom_call.1} parent=1 // pred_check_branch
      %254 = sbr.rel (0) target = $region29
    $region28: #{tpu_custom_call.1} parent=1 // pred_region
      %255 = dma.done [#allocation4], 256
    $region29: #{tpu_custom_call.1} parent=1 // pred_fallthru
      _
    %256 = vsyncpa [#allocation4], 1

</llo_original>
